<compile_context>
chip_gen: v5e
topology: v5e:2x2
jax: 0.10.0
libtpu: 0.0.40
codegen_flags: <defaults>
</compile_context>

<pallas_src>
import functools
import math

import jax
import jax.numpy as jnp
import numpy as np
from jax import lax
from jax.experimental import pallas as pl
from jax.experimental.pallas import tpu as pltpu


# ------------------------------ tiling helper ------------------------------

def _pick_tile(dim, target, align):
    """Largest `align`-multiple <= target that evenly divides `dim`; else dim."""
    if dim <= target:
        return dim
    t = (target // align) * align
    while t >= align:
        if dim % t == 0:
            return t
        t -= align
    return dim


# --------------------------- tiled linear (MXU) -----------------------------

def _matmul_kernel(x_ref, w_ref, o_ref, acc_ref):
    @pl.when(pl.program_id(2) == 0)
    def _():
        acc_ref[...] = jnp.zeros_like(acc_ref)

    acc_ref[...] += jnp.dot(
        x_ref[...], w_ref[...], preferred_element_type=jnp.float32
    )

    @pl.when(pl.program_id(2) == pl.num_programs(2) - 1)
    def _():
        o_ref[...] = acc_ref[...].astype(o_ref.dtype)


def linear_pallas(x, w, *, tm=256, tn=256, tk=512):
    """x: (M, K) @ w: (K, N) -> (M, N)   (nn.Linear, bias=False, W stored KxN)."""
    M, K = x.shape
    K2, N = w.shape
    assert K == K2
    tm = _pick_tile(M, tm, align=8)      # sublane axis of x / out
    tn = _pick_tile(N, tn, align=128)    # lane axis of w / out (lane-dense)
    tk = _pick_tile(K, tk, align=128)    # lane axis of x, sublane axis of w
    grid = (M // tm, N // tn, K // tk)

    itemsize = x.dtype.itemsize
    cost = pl.CostEstimate(
        flops=2 * M * N * K,
        transcendentals=0,
        bytes_accessed=(M * K + K * N + M * N) * itemsize,
    )
    return pl.pallas_call(
        _matmul_kernel,
        out_shape=jax.ShapeDtypeStruct((M, N), x.dtype),
        grid_spec=pltpu.PrefetchScalarGridSpec(
            num_scalar_prefetch=0,
            grid=grid,
            in_specs=[
                pl.BlockSpec((tm, tk), lambda i, j, k: (i, k)),
                pl.BlockSpec((tk, tn), lambda i, j, k: (k, j)),
            ],
            out_specs=pl.BlockSpec((tm, tn), lambda i, j, k: (i, j)),
            scratch_shapes=[pltpu.VMEM((tm, tn), jnp.float32)],
        ),
        compiler_params=pltpu.CompilerParams(
            dimension_semantics=("parallel", "parallel", "arbitrary"),
        ),
        cost_estimate=cost,
    )(x, w)


# --------------------- flash attention (online softmax) ---------------------

def _flash_kernel(q_ref, k_ref, v_ref, o_ref, m_sc, l_sc, acc_sc, *, scale):
    ki = pl.program_id(3)

    @pl.when(ki == 0)
    def _():
        m_sc[...] = jnp.full_like(m_sc, -jnp.inf)
        l_sc[...] = jnp.zeros_like(l_sc)
        acc_sc[...] = jnp.zeros_like(acc_sc)

    q = q_ref[0, 0]                      # (tq, Dh)
    k = k_ref[0, 0]                      # (tk, Dh)
    v = v_ref[0, 0]                      # (tk, Dh)

    # Fold the 1/sqrt(Dh) scale into q (tq*Dh muls instead of tq*tk).
    qs = q * scale
    # Contract on the last dims directly -- no materialized k.T.
    s = lax.dot_general(
        qs, k, dimension_numbers=(((1,), (1,)), ((), ())),
        preferred_element_type=jnp.float32,
    )                                     # (tq, tk) f32

    m_prev = m_sc[...]
    m_new = jnp.maximum(m_prev, jnp.max(s, axis=-1, keepdims=True))
    alpha = jnp.exp(m_prev - m_new)
    p = jnp.exp(s - m_new)
    l_sc[...] = alpha * l_sc[...] + jnp.sum(p, axis=-1, keepdims=True)
    acc_sc[...] = alpha * acc_sc[...] + jnp.dot(
        p.astype(v.dtype), v, preferred_element_type=jnp.float32
    )
    m_sc[...] = m_new

    @pl.when(ki == pl.num_programs(3) - 1)
    def _():
        o_ref[0, 0] = (
            acc_sc[...] * pl.reciprocal(l_sc[...], approx=True)
        ).astype(o_ref.dtype)


def flash_attention_pallas(q, k, v, *, n_rep, tq_target=256, tk_target=512):
    """q: (B, H, S, Dh); k, v: (B, H_kv, S, Dh) with H = H_kv * n_rep."""
    B, H, S, Dh = q.shape
    _, Hkv, Sk, _ = k.shape
    assert H == Hkv * n_rep
    scale = 1.0 / math.sqrt(Dh)
    tq = _pick_tile(S, tq_target, align=8)
    tk = _pick_tile(Sk, tk_target, align=8)
    grid = (B, H, S // tq, Sk // tk)

    itemsize = q.dtype.itemsize
    cost = pl.CostEstimate(
        flops=4 * B * H * S * Sk * Dh,
        transcendentals=B * H * S * Sk,
        bytes_accessed=(2 * q.size + k.size + v.size) * itemsize,
    )
    kernel = functools.partial(_flash_kernel, scale=scale)
    return pl.pallas_call(
        kernel,
        out_shape=jax.ShapeDtypeStruct((B, H, S, Dh), q.dtype),
        grid_spec=pltpu.PrefetchScalarGridSpec(
            num_scalar_prefetch=0,
            grid=grid,
            in_specs=[
                pl.BlockSpec((1, 1, tq, Dh), lambda b, h, qi, ki: (b, h, qi, 0)),
                # GQA: no jnp.repeat -- map query head h -> kv head h // n_rep.
                pl.BlockSpec((1, 1, tk, Dh),
                             lambda b, h, qi, ki: (b, h // n_rep, ki, 0)),
                pl.BlockSpec((1, 1, tk, Dh),
                             lambda b, h, qi, ki: (b, h // n_rep, ki, 0)),
            ],
            out_specs=pl.BlockSpec((1, 1, tq, Dh),
                                   lambda b, h, qi, ki: (b, h, qi, 0)),
            scratch_shapes=[
                pltpu.VMEM((tq, 1), jnp.float32),   # running max m
                pltpu.VMEM((tq, 1), jnp.float32),   # running denom l
                pltpu.VMEM((tq, Dh), jnp.float32),  # running accumulator
            ],
        ),
        compiler_params=pltpu.CompilerParams(
            dimension_semantics=("parallel", "parallel", "parallel", "arbitrary"),
        ),
        cost_estimate=cost,
    )(q, k, v)


# ------------------------------- RoPE glue ----------------------------------

def rope_tables(seq_len, head_dim, theta):
    """cos/sin tables, shape (S, head_dim // 2)."""
    freqs = 1.0 / theta ** (
        jnp.arange(0, head_dim, 2)[: head_dim // 2].astype(jnp.float32) / head_dim
    )
    positions = jnp.arange(seq_len, dtype=jnp.float32)
    angles = jnp.outer(positions, freqs)
    return jnp.cos(angles), jnp.sin(angles)


def _deinterleave_cols(w, n_heads_w, head_dim):
    """Permute projection output columns per head to [even lanes | odd lanes].

    This lets RoPE be applied in the lane-dense rotate-half form.  Since the
    same permutation is applied to q and k, q @ k.T is unchanged; v and the
    output projection are untouched, so module semantics are preserved.
    """
    perm = np.concatenate([np.arange(0, head_dim, 2), np.arange(1, head_dim, 2)])
    full = (np.arange(n_heads_w)[:, None] * head_dim + perm[None, :]).reshape(-1)
    return w[:, full]


def apply_rope_half(x, cos, sin):
    """x: (B, S, H, Dh) in de-interleaved (evens | odds) per-head layout."""
    half = x.shape[-1] // 2
    xe = x[..., :half].astype(jnp.float32)
    xo = x[..., half:].astype(jnp.float32)
    c = cos[None, :, None, :]
    s = sin[None, :, None, :]
    out = jnp.concatenate([xe * c - xo * s, xe * s + xo * c], axis=-1)
    return out.astype(x.dtype)


def apply_rope_interleaved(x, cos, sin):
    """Reference-only: PyTorch view_as_complex-style interleaved rotation."""
    B, S, H, Dh = x.shape
    x2 = x.reshape(B, S, H, Dh // 2, 2)
    xr, xi = x2[..., 0], x2[..., 1]
    c = cos[None, :, None, :]
    s = sin[None, :, None, :]
    out_r = xr * c - xi * s
    out_i = xr * s + xi * c
    return jnp.stack([out_r, out_i], axis=-1).reshape(B, S, H, Dh).astype(x.dtype)


# ------------------------------ forward pass ---------------------------------

def attention_forward(x, params, *, n_heads, n_kv_heads, theta):
    """Equivalent of Attention.forward(input, mask=None, inference_mode=False)."""
    B, S, D = x.shape
    head_dim = D // n_heads
    n_rep = n_heads // n_kv_heads

    # Per-head column permutation of wq/wk so RoPE can use the rotate-half form
    # (cheap weight-side permutation; could be folded into weight storage).
    wq = _deinterleave_cols(params["wq"], n_heads, head_dim)
    wk = _deinterleave_cols(params["wk"], n_kv_heads, head_dim)

    x2d = x.reshape(B * S, D)
    q = linear_pallas(x2d, wq).reshape(B, S, n_heads, head_dim)
    k = linear_pallas(x2d, wk).reshape(B, S, n_kv_heads, head_dim)
    v = linear_pallas(x2d, params["wv"]).reshape(B, S, n_kv_heads, head_dim)

    cos, sin = rope_tables(S, head_dim, theta)
    q = apply_rope_half(q, cos, sin)
    k = apply_rope_half(k, cos, sin)

    # Head-major layout for the attention kernel; GQA expansion handled inside
    # the kernel's index_map (no jnp.repeat, no duplicated KV HBM traffic).
    q = jnp.transpose(q, (0, 2, 1, 3))   # (B, H,   S, Dh)
    k = jnp.transpose(k, (0, 2, 1, 3))   # (B, Hkv, S, Dh)
    v = jnp.transpose(v, (0, 2, 1, 3))   # (B, Hkv, S, Dh)

    o = flash_attention_pallas(q, k, v, n_rep=n_rep)          # (B, H, S, Dh)
    o = jnp.transpose(o, (0, 2, 1, 3)).reshape(B * S, D)
    return linear_pallas(o, params["wo"]).reshape(B, S, D)


def attention_reference(x, params, *, n_heads, n_kv_heads, theta):
    """Pure-JAX reference mirroring the PyTorch forward for verification."""
    B, S, D = x.shape
    head_dim = D // n_heads
    n_rep = n_heads // n_kv_heads
    q = (x @ params["wq"]).reshape(B, S, n_heads, head_dim)
    k = (x @ params["wk"]).reshape(B, S, n_kv_heads, head_dim)
    v = (x @ params["wv"]).reshape(B, S, n_kv_heads, head_dim)
    cos, sin = rope_tables(S, head_dim, theta)
    q = apply_rope_interleaved(q, cos, sin)
    k = apply_rope_interleaved(k, cos, sin)
    if n_rep > 1:
        k = jnp.repeat(k, n_rep, axis=2)
        v = jnp.repeat(v, n_rep, axis=2)
    q, k, v = (jnp.transpose(t, (0, 2, 1, 3)) for t in (q, k, v))
    scores = jnp.einsum("bhqd,bhkd->bhqk", q, k) / math.sqrt(head_dim)
    scores = jax.nn.softmax(scores.astype(jnp.float32), axis=-1).astype(q.dtype)
    out = jnp.einsum("bhqk,bhkd->bhqd", scores, v)
    out = jnp.transpose(out, (0, 2, 1, 3)).reshape(B, S, D)
    return out @ params["wo"]


# ---------------------------------- main -------------------------------------

if __name__ == "__main__":
    # Small config consistent with the module (toy shapes).
    B, S, D = 2, 8, 32
    n_heads, n_kv_heads = 4, 2
    head_dim = D // n_heads
    theta = 10000.0

    key = jax.random.PRNGKey(0)
    kx, kq, kk, kv, ko = jax.random.split(key, 5)
    x = jax.random.normal(kx, (B, S, D), dtype=jnp.float32)

    # Deterministic Linear weights (bias=False), stored as (in, out): y = x @ W.
    scale = 1.0 / math.sqrt(D)
    params = {
        "wq": jax.random.normal(kq, (D, n_heads * head_dim), dtype=jnp.float32) * scale,
        "wk": jax.random.normal(kk, (D, n_kv_heads * head_dim), dtype=jnp.float32) * scale,
        "wv": jax.random.normal(kv, (D, n_kv_heads * head_dim), dtype=jnp.float32) * scale,
        "wo": jax.random.normal(ko, (n_heads * head_dim, D), dtype=jnp.float32) * scale,
    }
    # NOTE: for production configs, cast x/weights to bfloat16 before the
    # pallas_calls (f32 accumulation is kept inside the kernels).

    out = attention_forward(x, params, n_heads=n_heads, n_kv_heads=n_kv_heads, theta=theta)
    out = jax.block_until_ready(out)

    ref = attention_reference(x, params, n_heads=n_heads, n_kv_heads=n_kv_heads, theta=theta)
    ref = jax.block_until_ready(ref)

    assert out.shape == (B, S, D)
    np.testing.assert_allclose(np.asarray(out), np.asarray(ref), rtol=2e-2, atol=2e-2)
    print("KERNEL_OK")
</pallas_src>

<mosaic_0001>
module attributes {stable_mosaic.version = 11 : i64} {
  func.func @_matmul_kernel(%arg0: i32, %arg1: i32, %arg2: i32, %arg3: memref<16x32xf32, #tpu.memory_space<vmem>>, %arg4: memref<32x32xf32, #tpu.memory_space<vmem>>, %arg5: memref<16x32xf32, #tpu.memory_space<vmem>>, %arg6: memref<16x32xf32, #tpu.memory_space<vmem>>) attributes {dimension_semantics = [#tpu.dimension_semantics<parallel>, #tpu.dimension_semantics<parallel>, #tpu.dimension_semantics<arbitrary>], iteration_bounds = array<i64: 1, 1, 1>, scalar_prefetch = 0 : i64, scratch_operands = 1 : i64, tpu.core_type = #tpu.core_type<tc>, window_params = [{transform_indices = @transform_0, window_bounds = array<i64: 16, 32>}, {transform_indices = @transform_1, window_bounds = array<i64: 32, 32>}, {transform_indices = @transform_2, window_bounds = array<i64: 16, 32>}]} {
    %c0_i32 = arith.constant 0 : i32
    %0 = arith.cmpi eq, %arg2, %c0_i32 : i32
    %1 = arith.extui %0 : i1 to i32
    %c0_i32_0 = arith.constant 0 : i32
    %2 = arith.cmpi ne, %1, %c0_i32_0 : i32
    scf.if %2 {
      %cst_10 = arith.constant 0.000000e+00 : f32
      %12 = vector.broadcast %cst_10 : f32 to vector<16x32xf32>
      %c0_11 = arith.constant 0 : index
      %c0_12 = arith.constant 0 : index
      %13 = vector.load %arg6[%c0_11, %c0_12] : memref<16x32xf32, #tpu.memory_space<vmem>>, vector<16x32xf32>
      tpu.vector_store %arg6[%c0_11, %c0_12], %12 {strides = array<i32>} : memref<16x32xf32, #tpu.memory_space<vmem>>, vector<16x32xf32>,
    } else {
    }
    %c0 = arith.constant 0 : index
    %c0_1 = arith.constant 0 : index
    %3 = vector.load %arg6[%c0, %c0_1] : memref<16x32xf32, #tpu.memory_space<vmem>>, vector<16x32xf32>
    %c0_2 = arith.constant 0 : index
    %c0_3 = arith.constant 0 : index
    %4 = vector.load %arg3[%c0_2, %c0_3] : memref<16x32xf32, #tpu.memory_space<vmem>>, vector<16x32xf32>
    %c0_4 = arith.constant 0 : index
    %c0_5 = arith.constant 0 : index
    %5 = vector.load %arg4[%c0_4, %c0_5] : memref<32x32xf32, #tpu.memory_space<vmem>>, vector<32x32xf32>
    %cst = arith.constant dense<0.000000e+00> : vector<16x32xf32>
    %6 = tpu.matmul %4, %5, %cst {dimension_numbers = #tpu.dot_dimension_numbers<[1], [0], [0], [1], [0, 0, 1, 1], [], []>} : vector<16x32xf32>, vector<32x32xf32>, vector<16x32xf32> -> vector<16x32xf32>
    %7 = arith.addf %3, %6 : vector<16x32xf32>
    %c0_6 = arith.constant 0 : index
    %c0_7 = arith.constant 0 : index
    %8 = vector.load %arg6[%c0_6, %c0_7] : memref<16x32xf32, #tpu.memory_space<vmem>>, vector<16x32xf32>
    tpu.vector_store %arg6[%c0_6, %c0_7], %7 {strides = array<i32>} : memref<16x32xf32, #tpu.memory_space<vmem>>, vector<16x32xf32>,
    %c0_i32_8 = arith.constant 0 : i32
    %9 = arith.cmpi eq, %arg2, %c0_i32_8 : i32
    %10 = arith.extui %9 : i1 to i32
    %c0_i32_9 = arith.constant 0 : i32
    %11 = arith.cmpi ne, %10, %c0_i32_9 : i32
    scf.if %11 {
      %c0_10 = arith.constant 0 : index
      %c0_11 = arith.constant 0 : index
      %12 = vector.load %arg6[%c0_10, %c0_11] : memref<16x32xf32, #tpu.memory_space<vmem>>, vector<16x32xf32>
      %c0_12 = arith.constant 0 : index
      %c0_13 = arith.constant 0 : index
      %13 = vector.load %arg5[%c0_12, %c0_13] : memref<16x32xf32, #tpu.memory_space<vmem>>, vector<16x32xf32>
      tpu.vector_store %arg5[%c0_12, %c0_13], %12 {strides = array<i32>} : memref<16x32xf32, #tpu.memory_space<vmem>>, vector<16x32xf32>,
    } else {
    }
    return
  }
  func.func @transform_0(%arg0: i32, %arg1: i32, %arg2: i32) -> (i32, i32) {
    %c0_i32 = arith.constant 0 : i32
    return %arg0, %arg2 : i32, i32
  }
  func.func @transform_1(%arg0: i32, %arg1: i32, %arg2: i32) -> (i32, i32) {
    %c0_i32 = arith.constant 0 : i32
    return %arg2, %arg1 : i32, i32
  }
  func.func @transform_2(%arg0: i32, %arg1: i32, %arg2: i32) -> (i32, i32) {
    %c0_i32 = arith.constant 0 : i32
    return %arg0, %arg1 : i32, i32
  }
}

</mosaic_0001>

<llo_original>
// kernel: tpu_custom_call.1
$region0: #{tpu_custom_call.1}
  #allocation0 [shape = 'u32[]', space=smem, size = 0x4, offset = 0x4, fixed_abs, tag = 'smem constant byte address 0x4 - core index']
  #allocation1 [shape = 'u32[72,128]{1,0:T(1,128)}', space=vmem, size = 0x9000, scoped, tag = 'internal scratch']
  #allocation2 [shape = 'f32[16,32]{1,0:T(8,128)}', space=vmem, size = 0x2000, scoped, tag = 'scratch operand']
  %s0 = inlined_call_operand.hbm [shape: f32[16,32], index: 0, kind: input, shape index: {}]
  %s1 = inlined_call_operand.hbm [shape: f32[32,32], index: 1, kind: input, shape index: {}]
  %s2 = inlined_call_operand.hbm [shape: f32[16,32], index: 2, kind: output, shape index: {}]
  %s3 = sld [smem:[#allocation0]]
  $region34: #{tpu_custom_call.1} parent=0
    _
  %s5 = ssub.s32 1, %s3
  %s6 = scalar_select 0, %s5, %s3
  $region1: #{tpu_custom_call.1} parent=0
    #allocation3 [shape = 'u8[8192]{0}', space=vmem, size = 0x2000, scoped, tag = 'input window, operand 0, single buffered']
    #allocation4 [shape = 's32[1]{0}', space=sflag, size = 0x4, scoped, tag = 'scoped memory for tpu_custom_call.1']
    #allocation5 [shape = 's32[1]{0}', space=sflag, size = 0x4, scoped, tag = 'scoped memory for tpu_custom_call.1']
    #allocation6 [shape = 'u8[16384]{0}', space=vmem, size = 0x4000, scoped, tag = 'input window, operand 1, single buffered']
    #allocation7 [shape = 's32[1]{0}', space=sflag, size = 0x4, scoped, tag = 'scoped memory for tpu_custom_call.1']
    #allocation8 [shape = 'u8[8192]{0}', space=vmem, size = 0x2000, scoped, tag = 'output window, operand 0, single buffered']
    %7 = vsyncpa [#allocation4], 0
    %8 = vsyncpa [#allocation7], 0
    %9 = vsyncpa [#allocation5], 0
    // Predicated region
    $region2: #{tpu_custom_call.1} parent=1 // pred_check
      _
    $region3: #{tpu_custom_call.1} parent=1 // pred_check_branch
      %11 = sbr.rel (0) target = $region5
    $region4: #{tpu_custom_call.1} parent=1 // pred_region
      %13 = vsyncadd [#allocation4], 0
      %s14 = sshll.u32 %s0, 4
      %s15 = int_to_ptr.hbm [resolvable:$true] %s14
      %s16 = sshll.u32 [#allocation3], 4
      %s17 = int_to_ptr.vmem [resolvable:$true] %s16
      %22 = dma.hbm_to_vmem [thread:$0]  %s15, 256, %s17, [#allocation4], 128, 128, 8
    $region5: #{tpu_custom_call.1} parent=1 // pred_fallthru
      _
    // Predicated region
    $region6: #{tpu_custom_call.1} parent=1 // pred_check
      _
    $region7: #{tpu_custom_call.1} parent=1 // pred_check_branch
      %24 = sbr.rel (0) target = $region9
    $region8: #{tpu_custom_call.1} parent=1 // pred_region
      %26 = vsyncadd [#allocation7], 0
      %s27 = sshll.u32 %s1, 4
      %s28 = int_to_ptr.hbm [resolvable:$true] %s27
      %s29 = sshll.u32 [#allocation6], 4
      %s30 = int_to_ptr.vmem [resolvable:$true] %s29
      %35 = dma.hbm_to_vmem [thread:$0]  %s28, 512, %s30, [#allocation7], 128, 128, 8
    $region9: #{tpu_custom_call.1} parent=1 // pred_fallthru
      _
    // Predicated region
    $region10: #{tpu_custom_call.1} parent=1 // pred_check
      _
    $region11: #{tpu_custom_call.1} parent=1 // pred_check_branch
      %37 = sbr.rel (0) target = $region13
    $region12: #{tpu_custom_call.1} parent=1 // pred_region
      %39 = dma.done [#allocation4], 256
    $region13: #{tpu_custom_call.1} parent=1 // pred_fallthru
      _
    // Predicated region
    $region14: #{tpu_custom_call.1} parent=1 // pred_check
      _
    $region15: #{tpu_custom_call.1} parent=1 // pred_check_branch
      %41 = sbr.rel (0) target = $region17
    $region16: #{tpu_custom_call.1} parent=1 // pred_region
      %43 = dma.done [#allocation7], 512
    $region17: #{tpu_custom_call.1} parent=1 // pred_fallthru
      _
    %p44 = scmp.eq.s32.totalorder 0, 0
    // Predicated region
    $region18: #{tpu_custom_call.1} parent=1 // pred_check
      %p45 = pneg %p44
    $region19: #{tpu_custom_call.1} parent=1 // pred_check_branch
      %47 = sbr.rel (%p45) target = $region21
    $region20: #{tpu_custom_call.1} parent=1 // pred_region
      %vm48 = vcmask 261120
      %49 = vst.msk [vmem:[#allocation2] sm:$0xff] %vm48, 0.0
      %50 = vst.msk [vmem:[#allocation2 + $0x8] sm:$0xff] %vm48, 0.0
    $region21: #{tpu_custom_call.1} parent=1 // pred_fallthru
      _
    %v51 = vld [vmem:[#allocation2] sm:$0xff]
    %v52 = vld [vmem:[#allocation2 + $0x8] sm:$0xff]
    %v53 = vld [vmem:[#allocation3] sm:$0xff]
    %v54 = vld [vmem:[#allocation3 + $0x8] sm:$0xff]
    %v55 = vld [vmem:[#allocation6] sm:$0xff]
    %v56 = vld [vmem:[#allocation6 + $0x8] sm:$0xff]
    %v57 = vld [vmem:[#allocation6 + $0x10] sm:$0xff]
    %v58 = vld [vmem:[#allocation6 + $0x18] sm:$0xff]
    %vm59 = vcmask 261120
    %v61 = vsel %vm59, %v53, 0
    %v64 = vsel %vm59, %v54, 0
    %66 = vmatpush.msra.mxu0 0.0
    %67 = vmatpush.msra.mxu0 0.0
    %68 = vmatpush.msra.mxu0 0.0
    %69 = vmatpush.msra.mxu0 0.0
    %70 = vmatpush.msra.mxu0 0.0
    %71 = vmatpush.msra.mxu0 0.0
    %72 = vmatpush.msra.mxu0 0.0
    %73 = vmatpush.msra.mxu0 0.0
    %74 = vmatpush.msra.mxu0 0.0
    %75 = vmatpush.msra.mxu0 0.0
    %76 = vmatpush.msra.mxu0 0.0
    %77 = vmatpush.msra.mxu0 0.0
    %78 = vmatpush.msra.mxu0 %v58
    %79 = vmatpush.msra.mxu0 %v57
    %80 = vmatpush.msra.mxu0 %v56
    %81 = vmatpush.msra.mxu0 %v55
    %82 = vmatmul.f32.gmra.mxu0 %v61
    %v83 = vpop.f32.mrf.mxu0
    %v84 = vadd.f32 0.0, %v83
    %85 = vmatmul.f32.gmra.mxu0 %v64
    %v86 = vpop.f32.mrf.mxu0
    %v87 = vadd.f32 0.0, %v86
    %88 = vdwg.mxu0
    %v89 = vadd.f32 %v51, %v84
    %v90 = vadd.f32 %v52, %v87
    %91 = vst.msk [vmem:[#allocation2] sm:$0xff] %vm59, %v89
    %92 = vst.msk [vmem:[#allocation2 + $0x8] sm:$0xff] %vm59, %v90
    // Predicated region
    $region22: #{tpu_custom_call.1} parent=1 // pred_check
      %p93 = pneg %p44
    $region23: #{tpu_custom_call.1} parent=1 // pred_check_branch
      %95 = sbr.rel (%p93) target = $region25
    $region24: #{tpu_custom_call.1} parent=1 // pred_region
      %v96 = vld [vmem:[#allocation2] sm:$0xff]
      %v97 = vld [vmem:[#allocation2 + $0x8] sm:$0xff]
      %98 = vst.msk [vmem:[#allocation8] sm:$0xff] %vm59, %v96
      %99 = vst.msk [vmem:[#allocation8 + $0x8] sm:$0xff] %vm59, %v97
    $region25: #{tpu_custom_call.1} parent=1 // pred_fallthru
      _
    // Predicated region
    $region26: #{tpu_custom_call.1} parent=1 // pred_check
      _
    $region27: #{tpu_custom_call.1} parent=1 // pred_check_branch
      %101 = sbr.rel (0) target = $region29
    $region28: #{tpu_custom_call.1} parent=1 // pred_region
      %103 = vsyncadd [#allocation5], 0
      %s104 = sshll.u32 [#allocation8], 4
      %s105 = int_to_ptr.vmem [resolvable:$true] %s104
      %s106 = sshll.u32 %s2, 4
      %s107 = int_to_ptr.hbm [resolvable:$true] %s106
      %112 = dma.vmem_to_hbm [thread:$0]  %s105, 256, %s107, [#allocation5], 128, 128, 8
    $region29: #{tpu_custom_call.1} parent=1 // pred_fallthru
      _
    // Predicated region
    $region30: #{tpu_custom_call.1} parent=1 // pred_check
      _
    $region31: #{tpu_custom_call.1} parent=1 // pred_check_branch
      %114 = sbr.rel (0) target = $region33
    $region32: #{tpu_custom_call.1} parent=1 // pred_region
      %116 = dma.done [#allocation5], 256
    $region33: #{tpu_custom_call.1} parent=1 // pred_fallthru
      _
    %117 = vsyncpa [#allocation4], 1
    %118 = vsyncpa [#allocation7], 1
    %119 = vsyncpa [#allocation5], 1

</llo_original>
